<compile_context>
chip_gen: v5e
topology: v5e:2x2
jax: 0.10.0
libtpu: 0.0.40
codegen_flags: <defaults>
</compile_context>

<pallas_src>
import math

import jax
import jax.numpy as jnp
import numpy as np
from jax.experimental import pallas as pl
from jax.experimental.pallas import tpu as pltpu

# Pad-column bias: exp() underflows to 0, value stays finite in f32/bf16.
# (Would overflow to -inf for f16 activations; padded columns are sliced off
# in the wrapper, so this is only a documentation concern.)
_NEG_BIG = -1e30


# ------------------------------------------------------------------ kernel ---

def _proj_logsoftmax_kernel(x_ref, w_ref, b_ref, o_ref, acc_ref, m_ref, l_ref):
    j = pl.program_id(1)                 # vocab-tile index (innermost axis)
    nv, _, bv = acc_ref.shape            # static: (#vocab tiles, block_m, block_v)

    @pl.when(j == 0)
    def _init():
        m_ref[...] = jnp.full_like(m_ref, -jnp.inf)
        l_ref[...] = jnp.zeros_like(l_ref)

    # logits tile = x @ w_tile + b_tile  (bf16 MXU operands, f32 accumulation;
    # bias add / max / exp / log all stay in f32 until the final store).
    logits = jnp.dot(x_ref[...], w_ref[...],
                     preferred_element_type=jnp.float32)
    logits = logits + b_ref[...].astype(jnp.float32)

    # Stash raw f32 logits for the epilogue (one slot per vocab tile).
    acc_ref[j] = logits

    # Online logsumexp update (only per-row scalars live across vocab tiles).
    m_prev = m_ref[...]
    m_new = jnp.maximum(m_prev, jnp.max(logits, axis=-1, keepdims=True))
    l_ref[...] = (l_ref[...] * jnp.exp(m_prev - m_new)
                  + jnp.sum(jnp.exp(logits - m_new), axis=-1, keepdims=True))
    m_ref[...] = m_new

    # Epilogue at the last vocab step: lse = m + log(l); out = logits - lse.
    @pl.when(j == nv - 1)
    def _finalize():
        lse = m_ref[...] + jnp.log(l_ref[...])
        for t in range(nv):              # static unroll, static lane-dense slices
            o_ref[:, t * bv:(t + 1) * bv] = (acc_ref[t] - lse).astype(o_ref.dtype)


# ----------------------------------------------------------------- wrapper ---

def _vmem_capacity_bytes():
    try:
        return int(pltpu.get_tpu_info().vmem_capacity_bytes)
    except Exception:
        return 64 * 1024 * 1024          # conservative fallback (v7x per-TC VMEM)


def projection_log_softmax(x, w, b, *, block_m=None, block_v=None):
    """log_softmax(x @ w + b, axis=-1) as one fused Pallas TPU kernel.

    x: [..., d_model], w: [d_model, vocab] (transposed vs. torch Linear), b: [vocab].
    """
    *lead, D = x.shape
    V = w.shape[1]
    out_dtype = x.dtype
    out_itemsize = jnp.dtype(out_dtype).itemsize

    x2d = x.reshape(-1, D)
    M = x2d.shape[0]

    vmem_cap = _vmem_capacity_bytes()
    vmem_limit = max(32 * 1024 * 1024, int(vmem_cap * 0.8))
    budget = int(vmem_cap * 0.6)         # tile-sizing budget (headroom for compiler)

    # ---- vocab tile: multiple of 128 lanes, clamped to the padded vocab.
    if block_v is None:
        block_v = 2048
    block_v = max(128, min(block_v, pl.cdiv(V, 128) * 128))
    block_v = (block_v // 128) * 128

    # ---- token tile: multiple of 8 sublanes, clamped to the token count.
    if block_m is None:
        block_m = 256                    # fills the 256-wide MXU on v6e/v7x
    block_m = max(8, min((block_m // 8) * 8, pl.cdiv(M, 8) * 8))
    # Keep >= 2 M grid steps when possible so both v7x TensorCores get work.
    if M > 8:
        block_m = min(block_m, max(8, (pl.cdiv(M, 2) // 8) * 8))

    def _vmem_need(bm, bv):
        vp = pl.cdiv(V, bv) * bv
        return (2 * bm * D * 2           # x tile (bf16, double-buffered)
                + 2 * D * bv * 2         # weight vocab tile (bf16, double-buffered)
                + 2 * bv * 4             # bias vocab tile
                + bm * vp * 4            # f32 raw-logits scratch (full row)
                + 2 * bm * vp * out_itemsize  # resident output row block
                + 64 * bm)               # running max / sum + slack

    while _vmem_need(block_m, block_v) > budget and block_m > 8:
        block_m = max(8, (block_m // 2 // 8) * 8)
    while _vmem_need(block_m, block_v) > budget and block_v > 128:
        block_v = max(128, (block_v // 2 // 128) * 128)

    # ---- pad token axis to a tile multiple (rows independent; sliced off).
    m_pad = (-M) % block_m
    if m_pad:
        x2d = jnp.pad(x2d, ((0, m_pad), (0, 0)))
    Mp = M + m_pad

    # ---- pad vocab to a tile multiple. Padded columns: weight 0, bias -1e30,
    #      so they never affect the row max / logsumexp (and live in the last tile).
    b = b.astype(jnp.float32)
    v_pad = (-V) % block_v
    if v_pad:
        w = jnp.pad(w, ((0, 0), (0, v_pad)))
        b = jnp.pad(b, ((0, v_pad),), constant_values=_NEG_BIG)
    Vp = V + v_pad
    nm = Mp // block_m
    nv = Vp // block_v

    # ---- bf16 MXU operands (keep accumulation + epilogue math in f32).
    if x2d.dtype == jnp.float32:
        x2d = x2d.astype(jnp.bfloat16)
    if w.dtype == jnp.float32:
        w = w.astype(jnp.bfloat16)
    b = b.reshape(1, Vp)

    cost = pl.CostEstimate(
        flops=int(2 * Mp * D * Vp),
        transcendentals=int(Mp * Vp),
        bytes_accessed=int(Mp * D * 2 + nm * (D * Vp * 2 + Vp * 4)
                           + Mp * Vp * out_itemsize),
    )

    out = pl.pallas_call(
        _proj_logsoftmax_kernel,
        out_shape=jax.ShapeDtypeStruct((Mp, Vp), out_dtype),
        grid=(nm, nv),
        in_specs=[
            pl.BlockSpec((block_m, D), lambda i, j: (i, 0)),   # token tile (reused over j)
            pl.BlockSpec((D, block_v), lambda i, j: (0, j)),   # weight vocab tile
            pl.BlockSpec((1, block_v), lambda i, j: (0, j)),   # bias vocab tile
        ],
        out_specs=pl.BlockSpec((block_m, Vp), lambda i, j: (i, 0)),  # resident row
        scratch_shapes=[
            pltpu.VMEM((nv, block_m, block_v), jnp.float32),   # raw f32 logits stash
            pltpu.VMEM((block_m, 1), jnp.float32),             # running max
            pltpu.VMEM((block_m, 1), jnp.float32),             # running sumexp
        ],
        compiler_params=pltpu.CompilerParams(
            dimension_semantics=("parallel", "arbitrary"),
            vmem_limit_bytes=int(vmem_limit)),
        cost_estimate=cost,
    )(x2d, w, b)

    return out[:M, :V].reshape(*lead, V)


# ------------------------------------------------------------------- main ----

if __name__ == "__main__":
    B, T = 2, 8
    d_model, vocab_size = 32, 1000   # vocab deliberately not a multiple of 128

    key = jax.random.PRNGKey(0)
    k_x, k_w, k_b = jax.random.split(key, 3)

    x = jax.random.normal(k_x, (B, T, d_model), jnp.float32)

    # torch.nn.Linear default init: U(-1/sqrt(fan_in), 1/sqrt(fan_in))
    bound = 1.0 / math.sqrt(d_model)
    w = jax.random.uniform(k_w, (d_model, vocab_size), jnp.float32, -bound, bound)
    b = jax.random.uniform(k_b, (vocab_size,), jnp.float32, -bound, bound)

    # Small tiles so the vocab-tiled online-logsumexp path is exercised:
    # grid = (2 M tiles, 4 vocab tiles), last vocab tile carries the padding.
    out = projection_log_softmax(x, w, b, block_m=8, block_v=256)
    out = jax.block_until_ready(out)

    # Reference with the same MXU input precision as the kernel (bf16 operands,
    # f32 accumulation) -> tight tolerance validates the kernel math.
    ref_bf16 = jax.nn.log_softmax(
        jnp.dot(x.astype(jnp.bfloat16), w.astype(jnp.bfloat16),
                preferred_element_type=jnp.float32) + b, axis=-1)
    np.testing.assert_allclose(np.asarray(out), np.asarray(ref_bf16),
                               rtol=1e-3, atol=1e-3)

    # Full-f32 reference -> looser tolerance (kernel deliberately uses bf16 MXU operands).
    ref_f32 = jax.nn.log_softmax(x @ w + b, axis=-1)
    np.testing.assert_allclose(np.asarray(out), np.asarray(ref_f32),
                               rtol=5e-2, atol=5e-2)

    print("KERNEL_OK")
</pallas_src>

<mosaic_0001>
module attributes {stable_mosaic.version = 11 : i64} {
  func.func @_proj_logsoftmax_kernel(%arg0: i32, %arg1: i32, %arg2: memref<8x32xbf16, #tpu.memory_space<vmem>>, %arg3: memref<32x256xbf16, #tpu.memory_space<vmem>>, %arg4: memref<1x256xf32, #tpu.memory_space<vmem>>, %arg5: memref<8x1024xf32, #tpu.memory_space<vmem>>, %arg6: memref<4x8x256xf32, #tpu.memory_space<vmem>>, %arg7: memref<8x1xf32, #tpu.memory_space<vmem>>, %arg8: memref<8x1xf32, #tpu.memory_space<vmem>>) attributes {dimension_semantics = [#tpu.dimension_semantics<parallel>, #tpu.dimension_semantics<arbitrary>], iteration_bounds = array<i64: 2, 4>, scalar_prefetch = 0 : i64, scratch_operands = 3 : i64, tpu.core_type = #tpu.core_type<tc>, window_params = [{transform_indices = @transform_0, window_bounds = array<i64: 8, 32>}, {transform_indices = @transform_1, window_bounds = array<i64: 32, 256>}, {transform_indices = @transform_2, window_bounds = array<i64: 1, 256>}, {transform_indices = @transform_3, window_bounds = array<i64: 8, 1024>}]} {
    %c0_i32 = arith.constant 0 : i32
    %0 = arith.cmpi eq, %arg1, %c0_i32 : i32
    %1 = arith.extui %0 : i1 to i32
    %c0_i32_0 = arith.constant 0 : i32
    %2 = arith.cmpi ne, %1, %c0_i32_0 : i32
    scf.if %2 {
      %cst_19 = arith.constant 0xFF800000 : f32
      %32 = vector.broadcast %cst_19 : f32 to vector<8x1xf32>
      %c0_20 = arith.constant 0 : index
      %c0_21 = arith.constant 0 : index
      %33 = vector.load %arg7[%c0_20, %c0_21] : memref<8x1xf32, #tpu.memory_space<vmem>>, vector<8x1xf32>
      tpu.vector_store %arg7[%c0_20, %c0_21], %32 {strides = array<i32>} : memref<8x1xf32, #tpu.memory_space<vmem>>, vector<8x1xf32>,
      %cst_22 = arith.constant 0.000000e+00 : f32
      %34 = vector.broadcast %cst_22 : f32 to vector<8x1xf32>
      %c0_23 = arith.constant 0 : index
      %c0_24 = arith.constant 0 : index
      %35 = vector.load %arg8[%c0_23, %c0_24] : memref<8x1xf32, #tpu.memory_space<vmem>>, vector<8x1xf32>
      tpu.vector_store %arg8[%c0_23, %c0_24], %34 {strides = array<i32>} : memref<8x1xf32, #tpu.memory_space<vmem>>, vector<8x1xf32>,
    } else {
    }
    %c0 = arith.constant 0 : index
    %c0_1 = arith.constant 0 : index
    %3 = vector.load %arg2[%c0, %c0_1] : memref<8x32xbf16, #tpu.memory_space<vmem>>, vector<8x32xbf16>
    %c0_2 = arith.constant 0 : index
    %c0_3 = arith.constant 0 : index
    %4 = vector.load %arg3[%c0_2, %c0_3] : memref<32x256xbf16, #tpu.memory_space<vmem>>, vector<32x256xbf16>
    %cst = arith.constant dense<0.000000e+00> : vector<8x256xf32>
    %5 = tpu.matmul %3, %4, %cst {dimension_numbers = #tpu.dot_dimension_numbers<[1], [0], [0], [1], [0, 0, 1, 1], [], []>} : vector<8x32xbf16>, vector<32x256xbf16>, vector<8x256xf32> -> vector<8x256xf32>
    %c0_4 = arith.constant 0 : index
    %c0_5 = arith.constant 0 : index
    %6 = vector.load %arg4[%c0_4, %c0_5] : memref<1x256xf32, #tpu.memory_space<vmem>>, vector<1x256xf32>
    %7 = vector.broadcast %6 : vector<1x256xf32> to vector<8x256xf32>
    %8 = arith.addf %5, %7 : vector<8x256xf32>
    %9 = arith.index_cast %arg1 : i32 to index
    %c0_6 = arith.constant 0 : index
    %c0_7 = arith.constant 0 : index
    %10 = vector.load %arg6[%9, %c0_6, %c0_7] : memref<4x8x256xf32, #tpu.memory_space<vmem>>, vector<1x8x256xf32>
    %11 = vector.shape_cast %10 : vector<1x8x256xf32> to vector<8x256xf32>
    %12 = vector.shape_cast %8 : vector<8x256xf32> to vector<1x8x256xf32>
    tpu.vector_store %arg6[%9, %c0_6, %c0_7], %12 {strides = array<i32>} : memref<4x8x256xf32, #tpu.memory_space<vmem>>, vector<1x8x256xf32>,
    %c0_8 = arith.constant 0 : index
    %c0_9 = arith.constant 0 : index
    %13 = vector.load %arg7[%c0_8, %c0_9] : memref<8x1xf32, #tpu.memory_space<vmem>>, vector<8x1xf32>
    %cst_10 = arith.constant dense<0xFF800000> : vector<8xf32>
    %14 = vector.multi_reduction <maximumf>, %8, %cst_10 [1] : vector<8x256xf32> to vector<8xf32>
    %15 = vector.shape_cast %14 : vector<8xf32> to vector<8x1xf32>
    %16 = arith.maximumf %13, %15 : vector<8x1xf32>
    %c0_11 = arith.constant 0 : index
    %c0_12 = arith.constant 0 : index
    %17 = vector.load %arg8[%c0_11, %c0_12] : memref<8x1xf32, #tpu.memory_space<vmem>>, vector<8x1xf32>
    %18 = arith.subf %13, %16 : vector<8x1xf32>
    %19 = math.exp %18 : vector<8x1xf32>
    %20 = arith.mulf %17, %19 : vector<8x1xf32>
    %21 = vector.broadcast %16 : vector<8x1xf32> to vector<8x256xf32>
    %22 = arith.subf %8, %21 : vector<8x256xf32>
    %23 = math.exp %22 : vector<8x256xf32>
    %cst_13 = arith.constant dense<0.000000e+00> : vector<8xf32>
    %24 = vector.multi_reduction <add>, %23, %cst_13 [1] : vector<8x256xf32> to vector<8xf32>
    %25 = vector.shape_cast %24 : vector<8xf32> to vector<8x1xf32>
    %26 = arith.addf %20, %25 : vector<8x1xf32>
    %c0_14 = arith.constant 0 : index
    %c0_15 = arith.constant 0 : index
    %27 = vector.load %arg8[%c0_14, %c0_15] : memref<8x1xf32, #tpu.memory_space<vmem>>, vector<8x1xf32>
    tpu.vector_store %arg8[%c0_14, %c0_15], %26 {strides = array<i32>} : memref<8x1xf32, #tpu.memory_space<vmem>>, vector<8x1xf32>,
    %c0_16 = arith.constant 0 : index
    %c0_17 = arith.constant 0 : index
    %28 = vector.load %arg7[%c0_16, %c0_17] : memref<8x1xf32, #tpu.memory_space<vmem>>, vector<8x1xf32>
    tpu.vector_store %arg7[%c0_16, %c0_17], %16 {strides = array<i32>} : memref<8x1xf32, #tpu.memory_space<vmem>>, vector<8x1xf32>,
    %c3_i32 = arith.constant 3 : i32
    %29 = arith.cmpi eq, %arg1, %c3_i32 : i32
    %30 = arith.extui %29 : i1 to i32
    %c0_i32_18 = arith.constant 0 : i32
    %31 = arith.cmpi ne, %30, %c0_i32_18 : i32
    scf.if %31 {
      %c0_19 = arith.constant 0 : index
      %c0_20 = arith.constant 0 : index
      %32 = vector.load %arg7[%c0_19, %c0_20] : memref<8x1xf32, #tpu.memory_space<vmem>>, vector<8x1xf32>
      %c0_21 = arith.constant 0 : index
      %c0_22 = arith.constant 0 : index
      %33 = vector.load %arg8[%c0_21, %c0_22] : memref<8x1xf32, #tpu.memory_space<vmem>>, vector<8x1xf32>
      %34 = math.log %33 : vector<8x1xf32>
      %35 = arith.addf %32, %34 : vector<8x1xf32>
      %c0_23 = arith.constant 0 : index
      %c0_24 = arith.constant 0 : index
      %c0_25 = arith.constant 0 : index
      %36 = vector.load %arg6[%c0_23, %c0_24, %c0_25] : memref<4x8x256xf32, #tpu.memory_space<vmem>>, vector<1x8x256xf32>
      %37 = vector.shape_cast %36 : vector<1x8x256xf32> to vector<8x256xf32>
      %38 = vector.broadcast %35 : vector<8x1xf32> to vector<8x256xf32>
      %39 = arith.subf %37, %38 : vector<8x256xf32>
      %c0_26 = arith.constant 0 : index
      %c0_27 = arith.constant 0 : index
      %40 = vector.load %arg5[%c0_26, %c0_27] : memref<8x1024xf32, #tpu.memory_space<vmem>>, vector<8x256xf32>
      tpu.vector_store %arg5[%c0_26, %c0_27], %39 {strides = array<i32>} : memref<8x1024xf32, #tpu.memory_space<vmem>>, vector<8x256xf32>,
      %c1 = arith.constant 1 : index
      %c0_28 = arith.constant 0 : index
      %c0_29 = arith.constant 0 : index
      %41 = vector.load %arg6[%c1, %c0_28, %c0_29] : memref<4x8x256xf32, #tpu.memory_space<vmem>>, vector<1x8x256xf32>
      %42 = vector.shape_cast %41 : vector<1x8x256xf32> to vector<8x256xf32>
      %43 = vector.broadcast %35 : vector<8x1xf32> to vector<8x256xf32>
      %44 = arith.subf %42, %43 : vector<8x256xf32>
      %c0_30 = arith.constant 0 : index
      %c256 = arith.constant 256 : index
      %45 = vector.load %arg5[%c0_30, %c256] : memref<8x1024xf32, #tpu.memory_space<vmem>>, vector<8x256xf32>
      tpu.vector_store %arg5[%c0_30, %c256], %44 {strides = array<i32>} : memref<8x1024xf32, #tpu.memory_space<vmem>>, vector<8x256xf32>,
      %c2 = arith.constant 2 : index
      %c0_31 = arith.constant 0 : index
      %c0_32 = arith.constant 0 : index
      %46 = vector.load %arg6[%c2, %c0_31, %c0_32] : memref<4x8x256xf32, #tpu.memory_space<vmem>>, vector<1x8x256xf32>
      %47 = vector.shape_cast %46 : vector<1x8x256xf32> to vector<8x256xf32>
      %48 = vector.broadcast %35 : vector<8x1xf32> to vector<8x256xf32>
      %49 = arith.subf %47, %48 : vector<8x256xf32>
      %c0_33 = arith.constant 0 : index
      %c512 = arith.constant 512 : index
      %50 = vector.load %arg5[%c0_33, %c512] : memref<8x1024xf32, #tpu.memory_space<vmem>>, vector<8x256xf32>
      tpu.vector_store %arg5[%c0_33, %c512], %49 {strides = array<i32>} : memref<8x1024xf32, #tpu.memory_space<vmem>>, vector<8x256xf32>,
      %c3 = arith.constant 3 : index
      %c0_34 = arith.constant 0 : index
      %c0_35 = arith.constant 0 : index
      %51 = vector.load %arg6[%c3, %c0_34, %c0_35] : memref<4x8x256xf32, #tpu.memory_space<vmem>>, vector<1x8x256xf32>
      %52 = vector.shape_cast %51 : vector<1x8x256xf32> to vector<8x256xf32>
      %53 = vector.broadcast %35 : vector<8x1xf32> to vector<8x256xf32>
      %54 = arith.subf %52, %53 : vector<8x256xf32>
      %c0_36 = arith.constant 0 : index
      %c768 = arith.constant 768 : index
      %55 = vector.load %arg5[%c0_36, %c768] : memref<8x1024xf32, #tpu.memory_space<vmem>>, vector<8x256xf32>
      tpu.vector_store %arg5[%c0_36, %c768], %54 {strides = array<i32>} : memref<8x1024xf32, #tpu.memory_space<vmem>>, vector<8x256xf32>,
    } else {
    }
    return
  }
  func.func @transform_0(%arg0: i32, %arg1: i32) -> (i32, i32) {
    %c0_i32 = arith.constant 0 : i32
    %c0_i32_0 = arith.constant 0 : i32
    return %arg0, %c0_i32 : i32, i32
  }
  func.func @transform_1(%arg0: i32, %arg1: i32) -> (i32, i32) {
    %c0_i32 = arith.constant 0 : i32
    %c0_i32_0 = arith.constant 0 : i32
    return %c0_i32, %arg1 : i32, i32
  }
  func.func @transform_2(%arg0: i32, %arg1: i32) -> (i32, i32) {
    %c0_i32 = arith.constant 0 : i32
    %c0_i32_0 = arith.constant 0 : i32
    return %c0_i32, %arg1 : i32, i32
  }
  func.func @transform_3(%arg0: i32, %arg1: i32) -> (i32, i32) {
    %c0_i32 = arith.constant 0 : i32
    %c0_i32_0 = arith.constant 0 : i32
    return %arg0, %c0_i32 : i32, i32
  }
}

</mosaic_0001>

<llo_original>
// kernel: tpu_custom_call.1
$region0: #{tpu_custom_call.1}
  #allocation0 [shape = 'u32[]', space=smem, size = 0x4, offset = 0x4, fixed_abs, tag = 'smem constant byte address 0x4 - core index']
  #allocation1 [shape = 'u32[72,128]{1,0:T(1,128)}', space=vmem, size = 0x9000, scoped, tag = 'internal scratch']
  #allocation2 [shape = 'f32[4,8,256]{2,1,0:T(8,128)}', space=vmem, size = 0x8000, scoped, tag = 'scratch operand']
  #allocation3 [shape = 'f32[8,1]{1,0:T(8,128)}', space=vmem, size = 0x1000, scoped, tag = 'scratch operand']
  #allocation4 [shape = 'f32[8,1]{1,0:T(8,128)}', space=vmem, size = 0x1000, scoped, tag = 'scratch operand']
  %s0 = inlined_call_operand.hbm [shape: bf16[16,32], index: 0, kind: input, shape index: {}]
  %s1 = inlined_call_operand.hbm [shape: bf16[32,1024], index: 1, kind: input, shape index: {}]
  %s2 = inlined_call_operand.hbm [shape: f32[1,1024], index: 2, kind: input, shape index: {}]
  %s3 = inlined_call_operand.hbm [shape: f32[16,1024], index: 3, kind: output, shape index: {}]
  %s4 = sld [smem:[#allocation0]]
  $region65: #{tpu_custom_call.1} parent=0
    _
  %s6 = ssub.s32 1, %s4
  %s7 = scalar_select 0, %s6, %s4
  $region1: #{tpu_custom_call.1} parent=0
    #allocation5 [shape = 'u8[4096]{0}', space=vmem, size = 0x1000, scoped, tag = 'input window, operand 0']
    #allocation6 [shape = 's32[2]{0}', space=sflag, size = 0x8, scoped, tag = 'scoped memory for tpu_custom_call.1']
    #allocation7 [shape = 's32[2]{0}', space=sflag, size = 0x8, scoped, tag = 'scoped memory for tpu_custom_call.1']
    #allocation8 [shape = 'u8[32768]{0}', space=vmem, size = 0x8000, scoped, tag = 'input window, operand 1']
    #allocation9 [shape = 's32[2]{0}', space=sflag, size = 0x8, scoped, tag = 'scoped memory for tpu_custom_call.1']
    #allocation10 [shape = 'u8[2048]{0}', space=vmem, size = 0x800, scoped, tag = 'input window, operand 2']
    #allocation11 [shape = 'u8[65536]{0}', space=vmem, size = 0x10000, scoped, tag = 'output window, operand 0']
    %8 = vsyncpa [#allocation6], 0
    %s9 = scalar_lea.sflag [#allocation6], 1
    %10 = vsyncpa %s9, 0
    %11 = vsyncpa [#allocation9], 0
    %s12 = scalar_lea.sflag [#allocation9], 1
    %13 = vsyncpa %s12, 0
    %14 = vsyncpa [#allocation7], 0
    %s15 = scalar_lea.sflag [#allocation7], 1
    %16 = vsyncpa %s15, 0
    loop: start=0, step=1, limit=10
    $region2: #{tpu_custom_call.1} parent=1 // loop_pre_header
      _
    $region3: #{tpu_custom_call.1} parent=1 // loop_header
      %s18 = sphi 0, %s22
      %p19 = scmp.ge.s32.totalorder %s18, 10
      %s25 = sphi 0, %s37
      %s26 = sphi 0, %s33
      %s27 = sphi 0, %s25
      %s28 = sphi 0, %s26
      %s29 = sphi 0, %s27
      %s30 = sphi 0, %s28
      %s40 = sphi 0, %s42
      %s43 = sphi 0, %s40
      %s44 = sphi 0, %s43
      %s60 = sphi 0, %s44
      %s66 = sphi 0, %s68
      %s69 = sphi 0, %s66
      %s70 = sphi 0, %s69
      %s86 = sphi 0, %s70
      %s92 = sphi 0, %s94
      %s95 = sphi 0, %s92
      %s96 = sphi 0, %s95
      %s112 = sphi 0, %s96
      %s118 = sphi 0, %s120
      %s121 = sphi 0, %s118
      %s122 = sphi 0, %s121
      %s138 = sphi 0, %s122
    $region4: #{tpu_custom_call.1} parent=1 // loop_header_branch
      %21 = sbr.rel (%p19) target = $region8
    $region5: #{tpu_custom_call.1} parent=1 // loop_body
      %s23 = ssub.s32 %s18, 1
      %s24 = ssub.s32 %s18, 2
      %s31 = sadd.s32 1, %s26
      %p32 = scmp.ge.s32.totalorder %s31, 4
      %s33 = scalar_select %p32, 0, %s31
      %s34 = sadd.s32 1, %s25
      %s35 = scalar_select %p32, %s34, %s25
      %p36 = scmp.ge.s32.totalorder %s35, 2
      %s37 = scalar_select %p36, 0, %s35
      %s38 = ssub.s32 %s25, %s37
      %p39 = scmp.eq.s32.totalorder %s38, 0
      %s41 = sadd.s32 %s40, 1
      %s42 = scalar_select %p39, %s40, %s41
      %p45 = pneg %p39
      %p46 = scmp.eq.s32.totalorder %s18, 7
      %p47 = por %p45, %p46
      %p48 = scmp.ne.s32.totalorder %s40, %s43
      %p49 = scmp.eq.s32.totalorder %s18, 0
      %p50 = por %p48, %p49
      %p51 = scmp.ne.s32.totalorder %s40, %s43
      %p52 = scmp.eq.s32.totalorder %s23, 7
      %p53 = por %p51, %p52
      %p54 = scmp.ne.s32.totalorder %s43, %s44
      %p55 = scmp.eq.s32.totalorder %s23, 0
      %p56 = por %p54, %p55
      %p57 = scmp.ne.s32.totalorder %s43, %s44
      %p58 = scmp.eq.s32.totalorder %s24, 7
      %p59 = por %p57, %p58
      %p61 = scmp.ne.s32.totalorder %s44, %s60
      %p62 = scmp.eq.s32.totalorder %s24, 0
      %p63 = por %p61, %p62
      %s64 = ssub.s32 %s26, %s33
      %p65 = scmp.eq.s32.totalorder %s64, 0
      %s67 = sadd.s32 %s66, 1
      %s68 = scalar_select %p65, %s66, %s67
      %p71 = pneg %p65
      %p72 = scmp.eq.s32.totalorder %s18, 7
      %p73 = por %p71, %p72
      %p74 = scmp.ne.s32.totalorder %s66, %s69
      %p75 = scmp.eq.s32.totalorder %s18, 0
      %p76 = por %p74, %p75
      %p77 = scmp.ne.s32.totalorder %s66, %s69
      %p78 = scmp.eq.s32.totalorder %s23, 7
      %p79 = por %p77, %p78
      %p80 = scmp.ne.s32.totalorder %s69, %s70
      %p81 = scmp.eq.s32.totalorder %s23, 0
      %p82 = por %p80, %p81
      %p83 = scmp.ne.s32.totalorder %s69, %s70
      %p84 = scmp.eq.s32.totalorder %s24, 7
      %p85 = por %p83, %p84
      %p87 = scmp.ne.s32.totalorder %s70, %s86
      %p88 = scmp.eq.s32.totalorder %s24, 0
      %p89 = por %p87, %p88
      %s90 = ssub.s32 %s26, %s33
      %p91 = scmp.eq.s32.totalorder %s90, 0
      %s93 = sadd.s32 %s92, 1
      %s94 = scalar_select %p91, %s92, %s93
      %p97 = pneg %p91
      %p98 = scmp.eq.s32.totalorder %s18, 7
      %p99 = por %p97, %p98
      %p100 = scmp.ne.s32.totalorder %s92, %s95
      %p101 = scmp.eq.s32.totalorder %s18, 0
      %p102 = por %p100, %p101
      %p103 = scmp.ne.s32.totalorder %s92, %s95
      %p104 = scmp.eq.s32.totalorder %s23, 7
      %p105 = por %p103, %p104
      %p106 = scmp.ne.s32.totalorder %s95, %s96
      %p107 = scmp.eq.s32.totalorder %s23, 0
      %p108 = por %p106, %p107
      %p109 = scmp.ne.s32.totalorder %s95, %s96
      %p110 = scmp.eq.s32.totalorder %s24, 7
      %p111 = por %p109, %p110
      %p113 = scmp.ne.s32.totalorder %s96, %s112
      %p114 = scmp.eq.s32.totalorder %s24, 0
      %p115 = por %p113, %p114
      %s116 = ssub.s32 %s25, %s37
      %p117 = scmp.eq.s32.totalorder %s116, 0
      %s119 = sadd.s32 %s118, 1
      %s120 = scalar_select %p117, %s118, %s119
      %p123 = pneg %p117
      %p124 = scmp.eq.s32.totalorder %s18, 7
      %p125 = por %p123, %p124
      %p126 = scmp.ne.s32.totalorder %s118, %s121
      %p127 = scmp.eq.s32.totalorder %s18, 0
      %p128 = por %p126, %p127
      %p129 = scmp.ne.s32.totalorder %s118, %s121
      %p130 = scmp.eq.s32.totalorder %s23, 7
      %p131 = por %p129, %p130
      %p132 = scmp.ne.s32.totalorder %s121, %s122
      %p133 = scmp.eq.s32.totalorder %s23, 0
      %p134 = por %p132, %p133
      %p135 = scmp.ne.s32.totalorder %s121, %s122
      %p136 = scmp.eq.s32.totalorder %s24, 7
      %p137 = por %p135, %p136
      %p139 = scmp.ne.s32.totalorder %s122, %s138
      %p140 = scmp.eq.s32.totalorder %s24, 0
      %p141 = por %p139, %p140
      %p142 = scmp.le.s32.totalorder 1, %s18
      %p143 = scmp.lt.s32.totalorder %s18, 9
      %p144 = pnand %p142, %p143
      %p145 = pneg %p144
      // Predicated region
      $region9: #{tpu_custom_call.1} parent=5 // pred_check
        _
      $region10: #{tpu_custom_call.1} parent=5 // pred_check_branch
        %147 = sbr.rel (%p144) target = $region12
      $region11: #{tpu_custom_call.1} parent=5 // pred_region
        %s148 = ssub.s32 %s18, 1
      $region12: #{tpu_custom_call.1} parent=5 // pred_fallthru
        _
      %p149 = scmp.lt.s32.totalorder %s18, 8
      // Predicated region
      $region13: #{tpu_custom_call.1} parent=5 // pred_check
        %p150 = pneg %p149
      $region14: #{tpu_custom_call.1} parent=5 // pred_check_branch
        %152 = sbr.rel (%p150) target = $region16
      $region15: #{tpu_custom_call.1} parent=5 // pred_region
        // Predicated region
        $region17: #{tpu_custom_call.1} parent=15 // pred_check
          %p153 = pneg %p50
        $region18: #{tpu_custom_call.1} parent=15 // pred_check_branch
          %155 = sbr.rel (%p153) target = $region20
        $region19: #{tpu_custom_call.1} parent=15 // pred_region
          %s156 = sand.u32 %s40, 1
          %s157 = scalar_lea.sflag [#allocation6], %s156
          %s158 = sand.u32 %s40, 1
          %s159 = smul.addr %s158, 4
          %s160 = scalar_lea.vmem [#allocation5], %s159
          %162 = vsyncadd %s157, 0
          %s163 = smul.addr %s25, 4
          %s164 = scalar_lea.hbm %s0, %s163
          %s166 = sshll.u32 %s164, 4
          %s167 = int_to_ptr.hbm [resolvable:$true] %s166
          %s168 = sshll.u32 %s160, 4
          %s169 = int_to_ptr.vmem [resolvable:$true] %s168
          %171 = dma.hbm_to_vmem [thread:$0]  %s167, 64, %s169, %s157
        $region20: #{tpu_custom_call.1} parent=15 // pred_fallthru
          _
        // Predicated region
        $region21: #{tpu_custom_call.1} parent=15 // pred_check
          %p172 = pneg %p76
        $region22: #{tpu_custom_call.1} parent=15 // pred_check_branch
          %174 = sbr.rel (%p172) target = $region24
        $region23: #{tpu_custom_call.1} parent=15 // pred_region
          %s175 = sand.u32 %s18, 1
          %s176 = scalar_lea.sflag [#allocation9], %s175
          %s177 = sand.u32 %s66, 1
          %s178 = smul.addr %s177, 32
          %s179 = scalar_lea.vmem [#allocation8], %s178
          %s180 = smul.u32 2, %s26
          %182 = vsyncadd %s176, 0
          %s183 = smul.addr %s180, 4
          %s184 = scalar_lea.hbm %s1, %s183
          %s185 = sshll.u32 %s184, 4
          %s186 = int_to_ptr.hbm [resolvable:$true] %s185
          %s187 = sshll.u32 %s179, 4
          %s188 = int_to_ptr.vmem [resolvable:$true] %s187
          %193 = dma.hbm_to_vmem [thread:$0]  %s186, 512, %s188, %s176, 512, 128, 8
        $region24: #{tpu_custom_call.1} parent=15 // pred_fallthru
          _
        // Predicated region
        $region25: #{tpu_custom_call.1} parent=15 // pred_check
          %p194 = pneg %p102
        $region26: #{tpu_custom_call.1} parent=15 // pred_check_branch
          %196 = sbr.rel (%p194) target = $region28
        $region27: #{tpu_custom_call.1} parent=15 // pred_region
          %s197 = sand.u32 %s18, 1
          %s198 = scalar_lea.sflag [#allocation9], %s197
          %s199 = sand.u32 %s92, 1
          %s200 = smul.addr %s199, 2
          %s201 = scalar_lea.vmem [#allocation10], %s200
          %s202 = smul.u32 2, %s26
          %204 = vsyncadd %s198, 0
          %s205 = scalar_lea.hbm %s2, %s202
          %s207 = sshll.u32 %s205, 4
          %s208 = int_to_ptr.hbm [resolvable:$true] %s207
          %s209 = sshll.u32 %s201, 4
          %s210 = int_to_ptr.vmem [resolvable:$true] %s209
          %212 = dma.hbm_to_vmem [thread:$0]  %s208, 32, %s210, %s198
        $region28: #{tpu_custom_call.1} parent=15 // pred_fallthru
          _
      $region16: #{tpu_custom_call.1} parent=5 // pred_fallthru
        _
      %p213 = scmp.le.s32.totalorder 1, %s18
      %p214 = scmp.lt.s32.totalorder %s18, 9
      %p215 = pnand %p213, %p214
      %p216 = pneg %p215
      // Predicated region
      $region29: #{tpu_custom_call.1} parent=5 // pred_check
        _
      $region30: #{tpu_custom_call.1} parent=5 // pred_check_branch
        %218 = sbr.rel (%p215) target = $region32
      $region31: #{tpu_custom_call.1} parent=5 // pred_region
        %s219 = ssub.s32 %s18, 1
        %s220 = sand.u32 %s43, 1
        %s221 = scalar_lea.sflag [#allocation6], %s220
        %s222 = sand.u32 %s43, 1
        %s223 = smul.addr %s222, 4
        %s224 = scalar_lea.vmem [#allocation5], %s223
        // Predicated region
        $region33: #{tpu_custom_call.1} parent=31 // pred_check
          %p225 = pneg %p56
        $region34: #{tpu_custom_call.1} parent=31 // pred_check_branch
          %227 = sbr.rel (%p225) target = $region36
        $region35: #{tpu_custom_call.1} parent=31 // pred_region
          %229 = dma.done %s221, 64
        $region36: #{tpu_custom_call.1} parent=31 // pred_fallthru
          _
        %s230 = sand.u32 %s23, 1
        %s231 = scalar_lea.sflag [#allocation9], %s230
        %s232 = sand.u32 %s69, 1
        %s233 = smul.addr %s232, 32
        %s234 = scalar_lea.vmem [#allocation8], %s233
        // Predicated region
        $region37: #{tpu_custom_call.1} parent=31 // pred_check
          %p235 = pneg %p82
        $region38: #{tpu_custom_call.1} parent=31 // pred_check_branch
          %237 = sbr.rel (%p235) target = $region40
        $region39: #{tpu_custom_call.1} parent=31 // pred_region
          %239 = dma.done %s231, 512
        $region40: #{tpu_custom_call.1} parent=31 // pred_fallthru
          _
        %s240 = sand.u32 %s23, 1
        %s241 = scalar_lea.sflag [#allocation9], %s240
        %s242 = sand.u32 %s95, 1
        %s243 = smul.addr %s242, 2
        %s244 = scalar_lea.vmem [#allocation10], %s243
        // Predicated region
        $region41: #{tpu_custom_call.1} parent=31 // pred_check
          %p245 = pneg %p108
        $region42: #{tpu_custom_call.1} parent=31 // pred_check_branch
          %247 = sbr.rel (%p245) target = $region44
        $region43: #{tpu_custom_call.1} parent=31 // pred_region
          %249 = dma.done %s241, 32
        $region44: #{tpu_custom_call.1} parent=31 // pred_fallthru
          _
        %s250 = sand.u32 %s43, 1
        %s251 = scalar_lea.sflag [#allocation6], %s250
        %s252 = sand.u32 %s43, 1
        %s253 = smul.addr %s252, 4
        %s254 = scalar_lea.vmem [#allocation5], %s253
        %p255 = pneg %p56
        %p256 = pneg %p53
        %s257 = sand.u32 %s23, 1
        %s258 = scalar_lea.sflag [#allocation9], %s257
        %s259 = sand.u32 %s69, 1
        %s260 = smul.addr %s259, 32
        %s261 = scalar_lea.vmem [#allocation8], %s260
        %p262 = pneg %p82
        %p263 = pneg %p79
        %s264 = sand.u32 %s23, 1
        %s265 = scalar_lea.sflag [#allocation9], %s264
        %s266 = sand.u32 %s95, 1
        %s267 = smul.addr %s266, 2
        %s268 = scalar_lea.vmem [#allocation10], %s267
        %p269 = pneg %p108
        %p270 = pneg %p105
        %p271 = pneg %p134
        %p272 = pneg %p131
        %s273 = sand.u32 %s121, 1
        %s274 = scalar_lea.sflag [#allocation7], %s273
        %s275 = sand.u32 %s121, 1
        %s276 = smul.addr %s275, 64
        %s277 = scalar_lea.vmem [#allocation11], %s276
        %s278 = smul.u32 2, %s28
        %s279 = smul.u32 2, %s28
        %p281 = scmp.eq.s32.totalorder %s28, 0
        // Predicated region
        $region45: #{tpu_custom_call.1} parent=31 // pred_check
          %p282 = pneg %p281
        $region46: #{tpu_custom_call.1} parent=31 // pred_check_branch
          %284 = sbr.rel (%p282) target = $region48
        $region47: #{tpu_custom_call.1} parent=31 // pred_region
          %vm285 = vcmask 7168
          %286 = vst.msk [vmem:[#allocation3] sm:$0xff] %vm285, -inf
          %287 = vst.msk [vmem:[#allocation4] sm:$0xff] %vm285, 0.0
        $region48: #{tpu_custom_call.1} parent=31 // pred_fallthru
          _
        %v288 = vld [vmem:[%s224] sm:$0xf]
        %v289 = vld [vmem:[%s234] sm:$0xff]
        %v290 = vld [vmem:[%s234 + $0x8] sm:$0xff]
        %v291 = vld [vmem:[%s234 + $0x10] sm:$0xff]
        %v292 = vld [vmem:[%s234 + $0x18] sm:$0xff]
        %v293 = vld [vmem:[%s244] sm:$0x3]
        %v295 = vperm.slane %v293, 0
        %v296 = vperm.slane %v293, 1
        %v303 = vunpack.c.l.b16 %v289
        %v304 = vunpack.c.h.b16 %v289
        %v305 = vunpack.c.l.b16 %v290
        %v306 = vunpack.c.h.b16 %v290
        %v307 = vunpack.c.l.b16 %v291
        %v308 = vunpack.c.h.b16 %v291
        %v309 = vunpack.c.l.b16 %v292
        %v310 = vunpack.c.h.b16 %v292
        %v311 = vpack.c.b16 %v305, %v303
        %v312 = vpack.c.b16 %v306, %v304
        %v313 = vpack.c.b16 %v309, %v307
        %v314 = vpack.c.b16 %v310, %v308
        %vm319 = vcmask 261120
        %v321 = vsel %vm319, %v288, 0
        %323 = vmatpush.bf16.msra.mxu0 0
        %324 = vmatpush.bf16.msra.mxu0 0
        %325 = vmatpush.bf16.msra.mxu0 0
        %326 = vmatpush.bf16.msra.mxu0 0
        %327 = vmatpush.bf16.msra.mxu0 0
        %328 = vmatpush.bf16.msra.mxu0 0
        %329 = vmatpush.bf16.msra.mxu0 %v313
        %330 = vmatpush.bf16.msra.mxu0 %v311
        %331 = vmatmul.bf16.gmra.mxu0 %v321
        %v332 = vpop.f32.mrf.mxu0
        %v333 = vadd.f32 %v295, %v332
        %v334 = vpop.f32.mrf.mxu0
        %335 = vdwg.mxu0
        %336 = vmatpush.bf16.msra.mxu0 0
        %337 = vmatpush.bf16.msra.mxu0 0
        %338 = vmatpush.bf16.msra.mxu0 0
        %339 = vmatpush.bf16.msra.mxu0 0
        %340 = vmatpush.bf16.msra.mxu0 0
        %341 = vmatpush.bf16.msra.mxu0 0
        %342 = vmatpush.bf16.msra.mxu0 %v314
        %343 = vmatpush.bf16.msra.mxu0 %v312
        %344 = vmatmul.bf16.gmra.mxu0 %v321
        %v345 = vpop.f32.mrf.mxu0
        %v346 = vadd.f32 %v296, %v345
        %v347 = vpop.f32.mrf.mxu0
        %348 = vdwg.mxu0
        %s349 = smul.u32 %s28, 2
        %s350 = smul.addr %s349, 8
        %s351 = scalar_lea.vmem [#allocation2], %s350
        %352 = vst [vmem:[%s351] sm:$0xff] %v333
        %353 = vst [vmem:[%s351 + $0x8] sm:$0xff] %v346
        %v354 = vld [vmem:[#allocation3] sm:$0xff]
        %v355 = vmax.f32 %v333, %v346
        %356 = vmax.xlane.f32.xlu0 %v355
        %v357 = vpop.xlane.xlu0 %356
        %v358 = vmax.f32 %v354, %v357
        %v359 = vld [vmem:[#allocation4] sm:$0xff]
        %v360 = vsub.f32 %v354, %v358
        %v361 = vmul.f32 %v360, 1.442695
        %v362 = vpow.pop %v361
        %v363 = vmul.f32 %v359, %v362
        %365 = vset.pattern.permute.xlu0 0
        %366 = vperm.xlu0 %365, %v358
        %v367 = vpop.permute.xlu0 %366
        %v369 = vsub.f32 %v333, %v367
        %v370 = vsub.f32 %v346, %v367
        %v371 = vmul.f32 %v369, 1.442695
        %v372 = vpow.pop %v371
        %v373 = vmul.f32 %v370, 1.442695
        %v374 = vpow.pop %v373
        %v375 = vadd.f32 %v372, %v374
        %376 = vadd.xlane.f32.xlu0 %v375
        %v377 = vpop.xlane.xlu0 %376
        %v378 = vadd.f32 %v363, %v377
        %vm379 = vcmask 7168
        %380 = vst.msk [vmem:[#allocation4] sm:$0xff] %vm379, %v378
        %381 = vst.msk [vmem:[#allocation3] sm:$0xff] %vm379, %v358
        %p382 = scmp.eq.s32.totalorder %s28, 3
        // Predicated region
        $region49: #{tpu_custom_call.1} parent=31 // pred_check
          %p383 = pneg %p382
        $region50: #{tpu_custom_call.1} parent=31 // pred_check_branch
          %385 = sbr.rel (%p383) target = $region52
        $region51: #{tpu_custom_call.1} parent=31 // pred_region
          %v386 = vld [vmem:[#allocation3] sm:$0xff]
          %v387 = vld [vmem:[#allocation4] sm:$0xff]
          %v388 = vlog2.pop %v387
          %v389 = vmul.f32 %v388, 0.6931472
          %v390 = vadd.f32 %v386, %v389
          %v391 = vld [vmem:[#allocation2] sm:$0xff]
          %v392 = vld [vmem:[#allocation2 + $0x8] sm:$0xff]
          %394 = vset.pattern.permute.xlu0 0
          %395 = vperm.xlu0 %394, %v390
          %v396 = vpop.permute.xlu0 %395
          %v398 = vsub.f32 %v391, %v396
          %v399 = vsub.f32 %v392, %v396
          %400 = vst [vmem:[%s277] sm:$0xff] %v398
          %401 = vst [vmem:[%s277 + $0x8] sm:$0xff] %v399
          %s402 = scalar_lea.vmem [#allocation2], 16
          %v403 = vld [vmem:[%s402] sm:$0xff]
          %v404 = vld [vmem:[%s402 + $0x8] sm:$0xff]
          %v405 = vsub.f32 %v403, %v396
          %v406 = vsub.f32 %v404, %v396
          %407 = vst [vmem:[%s277 + $0x10] sm:$0xff] %v405
          %408 = vst [vmem:[%s277 + $0x18] sm:$0xff] %v406
          %s409 = scalar_lea.vmem [#allocation2], 32
          %v410 = vld [vmem:[%s409] sm:$0xff]
          %v411 = vld [vmem:[%s409 + $0x8] sm:$0xff]
          %v412 = vsub.f32 %v410, %v396
          %v413 = vsub.f32 %v411, %v396
          %414 = vst [vmem:[%s277 + $0x20] sm:$0xff] %v412
          %415 = vst [vmem:[%s277 + $0x28] sm:$0xff] %v413
          %s416 = scalar_lea.vmem [#allocation2], 48
          %v417 = vld [vmem:[%s416] sm:$0xff]
          %v418 = vld [vmem:[%s416 + $0x8] sm:$0xff]
          %v419 = vsub.f32 %v417, %v396
          %v420 = vsub.f32 %v418, %v396
          %421 = vst [vmem:[%s277 + $0x30] sm:$0xff] %v419
          %422 = vst [vmem:[%s277 + $0x38] sm:$0xff] %v420
        $region52: #{tpu_custom_call.1} parent=31 // pred_fallthru
          _
        %s423 = sand.u32 %s121, 1
        %s424 = scalar_lea.sflag [#allocation7], %s423
        %s425 = sand.u32 %s121, 1
        %s426 = smul.addr %s425, 64
        %s427 = scalar_lea.vmem [#allocation11], %s426
        // Predicated region
        $region53: #{tpu_custom_call.1} parent=31 // pred_check
          %p428 = pneg %p131
        $region54: #{tpu_custom_call.1} parent=31 // pred_check_branch
          %430 = sbr.rel (%p428) target = $region56
        $region55: #{tpu_custom_call.1} parent=31 // pred_region
          %432 = vsyncadd %s424, 0
          %s433 = smul.addr %s27, 8
          %s434 = smul.addr %s433, 8
          %s435 = scalar_lea.hbm %s3, %s434
          %s437 = sshll.u32 %s427, 4
          %s438 = int_to_ptr.vmem [resolvable:$true] %s437
          %s439 = sshll.u32 %s435, 4
          %s440 = int_to_ptr.hbm [resolvable:$true] %s439
          %442 = dma.vmem_to_hbm [thread:$0]  %s438, 1024, %s440, %s424
        $region56: #{tpu_custom_call.1} parent=31 // pred_fallthru
          _
      $region32: #{tpu_custom_call.1} parent=5 // pred_fallthru
        _
      %p443 = scmp.le.s32.totalorder 2, %s18
      // Predicated region
      $region57: #{tpu_custom_call.1} parent=5 // pred_check
        %p444 = pneg %p443
      $region58: #{tpu_custom_call.1} parent=5 // pred_check_branch
        %446 = sbr.rel (%p444) target = $region60
      $region59: #{tpu_custom_call.1} parent=5 // pred_region
        %s447 = ssub.s32 %s18, 2
        // Predicated region
        $region61: #{tpu_custom_call.1} parent=59 // pred_check
          %p448 = pneg %p137
        $region62: #{tpu_custom_call.1} parent=59 // pred_check_branch
          %450 = sbr.rel (%p448) target = $region64
        $region63: #{tpu_custom_call.1} parent=59 // pred_region
          %s451 = sand.u32 %s122, 1
          %s452 = scalar_lea.sflag [#allocation7], %s451
          %s453 = sand.u32 %s122, 1
          %s454 = smul.addr %s453, 64
          %s455 = scalar_lea.vmem [#allocation11], %s454
          %457 = dma.done %s452, 1024
        $region64: #{tpu_custom_call.1} parent=59 // pred_fallthru
          _
      $region60: #{tpu_custom_call.1} parent=5 // pred_fallthru
        _
    $region6: #{tpu_custom_call.1} parent=1 // loop_footer
      %s22 = sadd.s32 1, %s18
    $region7: #{tpu_custom_call.1} parent=1 // loop_footer_branch
      %17 = sbr.rel target = $region3
    $region8: #{tpu_custom_call.1} parent=1 // loop_exit
      _
    %458 = vsyncpa [#allocation6], 1
    %s459 = scalar_lea.sflag [#allocation6], 1
    %460 = vsyncpa %s459, 1
    %461 = vsyncpa [#allocation9], 1
    %s462 = scalar_lea.sflag [#allocation9], 1
    %463 = vsyncpa %s462, 1
    %464 = vsyncpa [#allocation7], 1
    %s465 = scalar_lea.sflag [#allocation7], 1
    %466 = vsyncpa %s465, 1

</llo_original>
